<compile_context>
chip_gen: v7x
topology: tpu7x:2x2x1
jax: 0.10.0
libtpu: 0.0.40
codegen_flags: <defaults>
</compile_context>

<pallas_src>
import functools

import jax
import jax.numpy as jnp
import numpy as np
from jax.experimental import pallas as pl
from jax.experimental.pallas import tpu as pltpu


def _per_gen_config():
    """(tile_budget_bytes, vmem_limit_bytes, tensorcores_per_chip) for this backend."""
    kind = ""
    try:
        kind = jax.devices()[0].device_kind.lower()
    except Exception:
        pass
    is_v7 = ("v7" in kind) or ("7x" in kind)
    dual_tc = is_v7 or ("v4" in kind) or ("v5p" in kind)
    if is_v7:
        # v7x: 64 MiB physical VMEM per TensorCore.
        return 40 << 20, 56 << 20, 2
    vmem_cap = None
    try:
        vmem_cap = int(pltpu.get_tpu_info().vmem_capacity_bytes)
    except Exception:
        vmem_cap = None
    if vmem_cap is not None and vmem_cap <= (64 << 20):
        return 40 << 20, 56 << 20, (2 if dual_tc else 1)
    # v5e / v6e / v5p / v4: 128 MiB physical VMEM.
    return 64 << 20, 96 << 20, (2 if dual_tc else 1)


def _sublane_pack(itemsize):
    return {4: 8, 2: 16, 1: 32}.get(int(itemsize), 8)


def _auto_tile_rows(n_rows, n_classes, itemsize, tile_budget):
    """Largest row tile whose VMEM working set fits the per-generation budget."""
    pack = _sublane_pack(itemsize)
    # Per-row VMEM footprint:
    #   * double-buffered logits block (native dtype)       : 2 * C * itemsize
    #   * ~3 live f32 (TM, C) temporaries (cast/z/exp)      : 12 * C
    #   * y + alpha_y (TM, 1) blocks, dbl-buffered, padded
    #     to 128 lanes in VMEM                              : 2 * 2 * 512
    #   * ~8 (TM, 1) f32 per-row temporaries, lane-padded   : 8 * 512
    per_row = n_classes * (2 * int(itemsize) + 12) + 2 * 2 * 512 + 8 * 512
    tr = max(int(tile_budget) // per_row, pack)
    tr = (tr // pack) * pack
    if tr >= n_rows:
        return n_rows
    return tr


def _focal_kernel(x_ref, y_ref, ay_ref, loss_out_ref, cnt_out_ref,
                  loss_acc_ref, cnt_acc_ref, *, gamma, ignore_index,
                  n_rows, tile_rows, tiles_per_split):
    c = pl.program_id(0)   # split index ("parallel"; one per TensorCore on dual-TC chips)
    t = pl.program_id(1)   # row-tile index within the split ("arbitrary")

    @pl.when(t == 0)
    def _():
        loss_acc_ref[...] = jnp.zeros_like(loss_acc_ref)
        cnt_acc_ref[...] = jnp.zeros_like(cnt_acc_ref)

    # Global row ids of this logical tile (the DMA'd block index is clamped in
    # the index_map for out-of-range logical tiles; such rows are masked here).
    logical_tile = c * tiles_per_split + t
    row0 = logical_tile * tile_rows
    rows = jax.lax.broadcasted_iota(jnp.int32, (tile_rows, 1), 0) + row0
    in_bounds = rows < n_rows                                   # (TM, 1) bool

    x = x_ref[...].astype(jnp.float32)                          # (TM, C)
    y = y_ref[...]                                              # (TM, 1) int32
    alpha_y = ay_ref[...]                                       # (TM, 1) f32 (gathered in wrapper)

    n_classes = x.shape[-1]
    classes = jax.lax.broadcasted_iota(jnp.int32, (1, n_classes), 1)   # (1, C)
    hit = classes == y                                          # broadcast -> (TM, C) bool

    # log_softmax target value without materializing log_p.
    m = jnp.max(x, axis=-1, keepdims=True)                      # (TM, 1)
    x_y = jnp.sum(jnp.where(hit, x, 0.0), axis=-1, keepdims=True)   # (TM, 1), exact
    z = x - m
    lse = jnp.log(jnp.sum(jnp.exp(z), axis=-1, keepdims=True))  # (TM, 1)
    log_pt = (x_y - m) - lse                                    # (TM, 1)

    ce = -alpha_y * log_pt            # NLLLoss(weight=alpha, reduction='none')
    pt = jnp.exp(log_pt)
    base = jnp.maximum(1.0 - pt, 0.0)
    if gamma == 0.0:
        focal = jnp.ones_like(pt)
    elif float(gamma).is_integer() and 0.0 < gamma <= 8.0:
        focal = base                              # e.g. gamma==2 -> base*base
        for _ in range(int(gamma) - 1):
            focal = focal * base
    else:
        focal = jnp.where(base > 0.0,
                          jnp.power(jnp.maximum(base, 1e-30), jnp.float32(gamma)),
                          0.0)

    valid = jnp.logical_and(in_bounds, y != ignore_index)       # (TM, 1) bool
    # SELECT (not multiply): kills NaN/Inf coming from out-of-bounds garbage rows.
    contrib = jnp.where(valid, focal * ce, 0.0)                  # (TM, 1)

    # Per-step scalar accumulation (single XLU reduce + one-element RMW per step).
    loss_acc_ref[...] += jnp.sum(contrib, axis=0, keepdims=True)
    cnt_acc_ref[...] += jnp.sum(valid.astype(jnp.float32), axis=0, keepdims=True)

    @pl.when(t == pl.num_programs(1) - 1)
    def _():
        ri = jax.lax.broadcasted_iota(jnp.int32, (8, 128), 0)
        ci = jax.lax.broadcasted_iota(jnp.int32, (8, 128), 1)
        sel = jnp.logical_and(ri == 0, ci == 0)
        loss_out_ref[...] = jnp.where(sel, jnp.sum(loss_acc_ref[...]), 0.0)
        cnt_out_ref[...] = jnp.where(sel, jnp.sum(cnt_acc_ref[...]), 0.0)


def focal_loss(x, y, alpha=None, gamma=0.0, reduction='mean',
               ignore_index=-100, tile_rows=None):
    """Pallas FocalLoss forward. x: (N, C) float logits, y: (N,) int labels."""
    if reduction not in ('mean', 'sum'):
        # TODO(synk): 'none' reduction returns a dynamically-shaped (num_valid,)
        # tensor in PyTorch; not representable as a static Pallas output.
        raise ValueError('Only "mean" and "sum" reductions are supported.')

    N, C = x.shape
    if N == 0:
        return jnp.float32(0.0)

    itemsize = jnp.dtype(x.dtype).itemsize
    pack = _sublane_pack(itemsize)
    tile_budget, vmem_limit, num_tc = _per_gen_config()

    if tile_rows is None:
        tile_rows = _auto_tile_rows(N, C, itemsize, tile_budget)
    else:
        tile_rows = int(tile_rows)
        if tile_rows >= N:
            tile_rows = N
        else:
            tile_rows = max((tile_rows // pack) * pack, pack)

    n_tiles = -(-N // tile_rows)
    num_splits = min(num_tc, n_tiles)                 # 1 on single-TC v5e/v6e
    tiles_per_split = -(-n_tiles // num_splits)

    # Per-row side inputs: labels as an (N, 1) int32 column; alpha[y] gathered in
    # plain XLA (tiny (N,) gather) as an (N, 1) f32 column.  The big (N, C)
    # logits array is passed through untouched in its original dtype.
    y_i = y.astype(jnp.int32)
    y_col = y_i.reshape(N, 1)
    if alpha is None:
        alpha_y = jnp.ones((N, 1), jnp.float32)
    else:
        alpha_f = jnp.asarray(alpha, jnp.float32).reshape(C)
        alpha_y = jnp.take(alpha_f, jnp.clip(y_i, 0, C - 1), axis=0).reshape(N, 1)

    kernel = functools.partial(
        _focal_kernel, gamma=float(gamma), ignore_index=int(ignore_index),
        n_rows=N, tile_rows=tile_rows, tiles_per_split=tiles_per_split)

    def tile_idx(c, t):
        # The last split may own a logical tile past the end; clamp onto the last
        # real block (its rows are fully masked in-kernel via `in_bounds`).
        return (jnp.minimum(c * tiles_per_split + t, n_tiles - 1), 0)

    cost = pl.CostEstimate(
        flops=int(6 * N * C + 16 * N),
        transcendentals=int(N * C + 3 * N),
        bytes_accessed=int(N * C * itemsize + 2 * N * 4
                           + 2 * num_splits * 8 * 128 * 4),
    )

    # TODO(synk): for small class counts (C <= 128) a transposed, lane-dense
    # layout (classes on sublanes, rows on lanes) would be the next big win.
    loss_parts, cnt_parts = pl.pallas_call(
        kernel,
        out_shape=(jax.ShapeDtypeStruct((num_splits * 8, 128), jnp.float32),
                   jax.ShapeDtypeStruct((num_splits * 8, 128), jnp.float32)),
        grid_spec=pltpu.PrefetchScalarGridSpec(
            num_scalar_prefetch=0,
            grid=(num_splits, tiles_per_split),
            in_specs=[
                pl.BlockSpec((tile_rows, C), tile_idx),        # logits tile (native dtype)
                pl.BlockSpec((tile_rows, 1), tile_idx),        # labels tile
                pl.BlockSpec((tile_rows, 1), tile_idx),        # alpha[y] tile
            ],
            out_specs=[
                pl.BlockSpec((8, 128), lambda c, t: (c, 0)),   # per-split loss sum
                pl.BlockSpec((8, 128), lambda c, t: (c, 0)),   # per-split valid count
            ],
            scratch_shapes=[pltpu.VMEM((1, 1), jnp.float32),
                            pltpu.VMEM((1, 1), jnp.float32)],
        ),
        compiler_params=pltpu.CompilerParams(
            dimension_semantics=("parallel", "arbitrary"),
            vmem_limit_bytes=vmem_limit),
        cost_estimate=cost,
    )(x, y_col, alpha_y)

    s = jnp.sum(loss_parts)
    n = jnp.sum(cnt_parts)
    if reduction == 'sum':
        return s
    # 'mean' in the reference module is a plain mean over valid rows (NLLLoss is
    # run with reduction='none'); PyTorch returns 0.0 when every row is ignored.
    return jnp.where(n > 0, s / jnp.maximum(n, 1.0), jnp.float32(0.0))


def _focal_loss_ref(x, y, alpha, gamma, ignore_index, reduction='mean'):
    """Pure-numpy reference mirroring the PyTorch forward."""
    x = np.asarray(x, np.float32)
    y = np.asarray(y, np.int64)
    alpha = np.asarray(alpha, np.float32)
    mask = y != ignore_index
    yv, xv = y[mask], x[mask]
    if len(yv) == 0:
        return 0.0
    xs = xv - xv.max(axis=-1, keepdims=True)
    log_p = xs - np.log(np.exp(xs).sum(axis=-1, keepdims=True))
    log_pt = log_p[np.arange(len(yv)), yv]
    ce = -alpha[yv] * log_pt
    pt = np.exp(log_pt)
    focal = (1.0 - pt) ** gamma
    loss = focal * ce
    return float(loss.sum() if reduction == 'sum' else loss.mean())


if __name__ == "__main__":
    ignore_index = -100

    # Case 1: f32 logits, per-class alpha, gamma=2, 'mean', single full-extent block.
    kx, ky = jax.random.split(jax.random.PRNGKey(0))
    N, C = 16, 8
    x = jax.random.normal(kx, (N, C), dtype=jnp.float32) * 2.0
    y = jax.random.randint(ky, (N,), 0, C, dtype=jnp.int32)
    y = y.at[3].set(ignore_index).at[11].set(ignore_index)
    alpha = (jnp.arange(C, dtype=jnp.float32) + 1.0) / C

    out = focal_loss(x, y, alpha=alpha, gamma=2.0, reduction='mean',
                     ignore_index=ignore_index)
    out = jax.block_until_ready(out)
    ref = _focal_loss_ref(np.asarray(x), np.asarray(y), np.asarray(alpha),
                          2.0, ignore_index, reduction='mean')
    assert np.allclose(float(out), ref, rtol=1e-5, atol=1e-6), (float(out), ref)

    # Case 2: bf16 logits (no wrapper cast/pad), default alpha, 'sum', forced small
    # tiles to exercise the ragged last tile (and the clamped duplicate tile on
    # dual-TensorCore parts).
    kx2, ky2 = jax.random.split(jax.random.PRNGKey(1))
    N2, C2 = 40, 8
    x2 = (jax.random.normal(kx2, (N2, C2), dtype=jnp.float32) * 2.0).astype(jnp.bfloat16)
    y2 = jax.random.randint(ky2, (N2,), 0, C2, dtype=jnp.int32)
    y2 = y2.at[0].set(ignore_index).at[17].set(ignore_index)

    out2 = focal_loss(x2, y2, alpha=None, gamma=2.0, reduction='sum',
                      ignore_index=ignore_index, tile_rows=16)
    out2 = jax.block_until_ready(out2)
    ref2 = _focal_loss_ref(np.asarray(x2.astype(jnp.float32)), np.asarray(y2),
                           np.ones((C2,), np.float32), 2.0, ignore_index,
                           reduction='sum')
    assert np.allclose(float(out2), ref2, rtol=1e-4, atol=1e-4), (float(out2), ref2)

    # Case 3: non-integer gamma exercises the jnp.power path, 'mean'.
    kx3, ky3 = jax.random.split(jax.random.PRNGKey(2))
    N3, C3 = 24, 16
    x3 = jax.random.normal(kx3, (N3, C3), dtype=jnp.float32)
    y3 = jax.random.randint(ky3, (N3,), 0, C3, dtype=jnp.int32)
    y3 = y3.at[5].set(ignore_index)

    out3 = focal_loss(x3, y3, alpha=None, gamma=1.7, reduction='mean',
                      ignore_index=ignore_index)
    out3 = jax.block_until_ready(out3)
    ref3 = _focal_loss_ref(np.asarray(x3), np.asarray(y3),
                           np.ones((C3,), np.float32), 1.7, ignore_index,
                           reduction='mean')
    assert np.allclose(float(out3), ref3, rtol=1e-4, atol=1e-5), (float(out3), ref3)

    print("KERNEL_OK")
</pallas_src>

<mosaic_0001>
module attributes {stable_mosaic.version = 11 : i64} {
  func.func @_focal_kernel(%arg0: i32, %arg1: i32, %arg2: memref<16x8xf32, #tpu.memory_space<vmem>>, %arg3: memref<16x1xi32, #tpu.memory_space<vmem>>, %arg4: memref<16x1xf32, #tpu.memory_space<vmem>>, %arg5: memref<8x128xf32, #tpu.memory_space<vmem>>, %arg6: memref<8x128xf32, #tpu.memory_space<vmem>>, %arg7: memref<1x1xf32, #tpu.memory_space<vmem>>, %arg8: memref<1x1xf32, #tpu.memory_space<vmem>>) attributes {dimension_semantics = [#tpu.dimension_semantics<parallel>, #tpu.dimension_semantics<arbitrary>], iteration_bounds = array<i64: 1, 1>, scalar_prefetch = 0 : i64, scratch_operands = 2 : i64, tpu.core_type = #tpu.core_type<tc>, window_params = [{transform_indices = @transform_0, window_bounds = array<i64: 16, 8>}, {transform_indices = @transform_1, window_bounds = array<i64: 16, 1>}, {transform_indices = @transform_2, window_bounds = array<i64: 16, 1>}, {transform_indices = @transform_3, window_bounds = array<i64: 8, 128>}, {transform_indices = @transform_4, window_bounds = array<i64: 8, 128>}]} {
    %c0_i32 = arith.constant 0 : i32
    %0 = arith.cmpi eq, %arg1, %c0_i32 : i32
    %1 = arith.extui %0 : i1 to i32
    %c0_i32_0 = arith.constant 0 : i32
    %2 = arith.cmpi ne, %1, %c0_i32_0 : i32
    scf.if %2 {
      %cst_26 = arith.constant 0.000000e+00 : f32
      %62 = vector.broadcast %cst_26 : f32 to vector<1x1xf32>
      %c0_27 = arith.constant 0 : index
      %c0_28 = arith.constant 0 : index
      %63 = vector.load %arg7[%c0_27, %c0_28] : memref<1x1xf32, #tpu.memory_space<vmem>>, vector<1x1xf32>
      tpu.vector_store %arg7[%c0_27, %c0_28], %62 {strides = array<i32>} : memref<1x1xf32, #tpu.memory_space<vmem>>, vector<1x1xf32>,
      %cst_29 = arith.constant 0.000000e+00 : f32
      %64 = vector.broadcast %cst_29 : f32 to vector<1x1xf32>
      %c0_30 = arith.constant 0 : index
      %c0_31 = arith.constant 0 : index
      %65 = vector.load %arg8[%c0_30, %c0_31] : memref<1x1xf32, #tpu.memory_space<vmem>>, vector<1x1xf32>
      tpu.vector_store %arg8[%c0_30, %c0_31], %64 {strides = array<i32>} : memref<1x1xf32, #tpu.memory_space<vmem>>, vector<1x1xf32>,
    } else {
    }
    %c1_i32 = arith.constant 1 : i32
    %3 = arith.muli %arg0, %c1_i32 : i32
    %4 = arith.addi %3, %arg1 : i32
    %c16_i32 = arith.constant 16 : i32
    %5 = arith.muli %4, %c16_i32 : i32
    %6 = tpu.iota {dimensions = array<i32: 0>} : vector<16x1xi32>
    %7 = vector.broadcast %5 : i32 to vector<16x1xi32>
    %8 = arith.addi %6, %7 : vector<16x1xi32>
    %c16_i32_1 = arith.constant 16 : i32
    %9 = vector.broadcast %c16_i32_1 : i32 to vector<16x1xi32>
    %10 = arith.cmpi slt, %8, %9 : vector<16x1xi32>
    %c0 = arith.constant 0 : index
    %c0_2 = arith.constant 0 : index
    %11 = vector.load %arg2[%c0, %c0_2] : memref<16x8xf32, #tpu.memory_space<vmem>>, vector<16x8xf32>
    %c0_3 = arith.constant 0 : index
    %c0_4 = arith.constant 0 : index
    %12 = vector.load %arg3[%c0_3, %c0_4] : memref<16x1xi32, #tpu.memory_space<vmem>>, vector<16x1xi32>
    %c0_5 = arith.constant 0 : index
    %c0_6 = arith.constant 0 : index
    %13 = vector.load %arg4[%c0_5, %c0_6] : memref<16x1xf32, #tpu.memory_space<vmem>>, vector<16x1xf32>
    %14 = tpu.iota {dimensions = array<i32: 1>} : vector<1x8xi32>
    %15 = vector.broadcast %14 : vector<1x8xi32> to vector<16x8xi32>
    %16 = vector.broadcast %12 : vector<16x1xi32> to vector<16x8xi32>
    %17 = arith.cmpi eq, %15, %16 : vector<16x8xi32>
    %cst = arith.constant dense<0xFF800000> : vector<16xf32>
    %18 = vector.multi_reduction <maximumf>, %11, %cst [1] : vector<16x8xf32> to vector<16xf32>
    %19 = vector.shape_cast %18 : vector<16xf32> to vector<16x1xf32>
    %cst_7 = arith.constant 0.000000e+00 : f32
    %20 = vector.broadcast %cst_7 : f32 to vector<16x8xf32>
    %21 = arith.select %17, %11, %20 : vector<16x8xi1>, vector<16x8xf32>
    %cst_8 = arith.constant dense<0.000000e+00> : vector<16xf32>
    %22 = vector.multi_reduction <add>, %21, %cst_8 [1] : vector<16x8xf32> to vector<16xf32>
    %23 = vector.shape_cast %22 : vector<16xf32> to vector<16x1xf32>
    %24 = vector.broadcast %19 : vector<16x1xf32> to vector<16x8xf32>
    %25 = arith.subf %11, %24 : vector<16x8xf32>
    %26 = math.exp %25 : vector<16x8xf32>
    %cst_9 = arith.constant dense<0.000000e+00> : vector<16xf32>
    %27 = vector.multi_reduction <add>, %26, %cst_9 [1] : vector<16x8xf32> to vector<16xf32>
    %28 = vector.shape_cast %27 : vector<16xf32> to vector<16x1xf32>
    %29 = math.log %28 : vector<16x1xf32>
    %30 = arith.subf %23, %19 : vector<16x1xf32>
    %31 = arith.subf %30, %29 : vector<16x1xf32>
    %cst_10 = arith.constant 0.000000e+00 : f32
    %32 = vector.broadcast %cst_10 : f32 to vector<16x1xf32>
    %33 = arith.subf %32, %13 : vector<16x1xf32>
    %34 = arith.mulf %33, %31 : vector<16x1xf32>
    %35 = math.exp %31 : vector<16x1xf32>
    %cst_11 = arith.constant 1.000000e+00 : f32
    %36 = vector.broadcast %cst_11 : f32 to vector<16x1xf32>
    %37 = arith.subf %36, %35 : vector<16x1xf32>
    %cst_12 = arith.constant 0.000000e+00 : f32
    %38 = vector.broadcast %cst_12 : f32 to vector<16x1xf32>
    %39 = arith.maximumf %37, %38 : vector<16x1xf32>
    %40 = arith.mulf %39, %39 : vector<16x1xf32>
    %c-100_i32 = arith.constant -100 : i32
    %41 = vector.broadcast %c-100_i32 : i32 to vector<16x1xi32>
    %42 = arith.cmpi ne, %12, %41 : vector<16x1xi32>
    %43 = arith.andi %10, %42 : vector<16x1xi1>
    %44 = arith.mulf %40, %34 : vector<16x1xf32>
    %cst_13 = arith.constant 0.000000e+00 : f32
    %45 = vector.broadcast %cst_13 : f32 to vector<16x1xf32>
    %46 = arith.select %43, %44, %45 : vector<16x1xi1>, vector<16x1xf32>
    %c0_14 = arith.constant 0 : index
    %c0_15 = arith.constant 0 : index
    %47 = vector.load %arg7[%c0_14, %c0_15] : memref<1x1xf32, #tpu.memory_space<vmem>>, vector<1x1xf32>
    %cst_16 = arith.constant dense<0.000000e+00> : vector<1xf32>
    %48 = vector.multi_reduction <add>, %46, %cst_16 [0] : vector<16x1xf32> to vector<1xf32>
    %49 = vector.shape_cast %48 : vector<1xf32> to vector<1x1xf32>
    %50 = arith.addf %47, %49 : vector<1x1xf32>
    %c0_17 = arith.constant 0 : index
    %c0_18 = arith.constant 0 : index
    %51 = vector.load %arg7[%c0_17, %c0_18] : memref<1x1xf32, #tpu.memory_space<vmem>>, vector<1x1xf32>
    tpu.vector_store %arg7[%c0_17, %c0_18], %50 {strides = array<i32>} : memref<1x1xf32, #tpu.memory_space<vmem>>, vector<1x1xf32>,
    %c0_19 = arith.constant 0 : index
    %c0_20 = arith.constant 0 : index
    %52 = vector.load %arg8[%c0_19, %c0_20] : memref<1x1xf32, #tpu.memory_space<vmem>>, vector<1x1xf32>
    %53 = arith.extui %43 : vector<16x1xi1> to vector<16x1xi32>
    %54 = arith.sitofp %53 : vector<16x1xi32> to vector<16x1xf32>
    %cst_21 = arith.constant dense<0.000000e+00> : vector<1xf32>
    %55 = vector.multi_reduction <add>, %54, %cst_21 [0] : vector<16x1xf32> to vector<1xf32>
    %56 = vector.shape_cast %55 : vector<1xf32> to vector<1x1xf32>
    %57 = arith.addf %52, %56 : vector<1x1xf32>
    %c0_22 = arith.constant 0 : index
    %c0_23 = arith.constant 0 : index
    %58 = vector.load %arg8[%c0_22, %c0_23] : memref<1x1xf32, #tpu.memory_space<vmem>>, vector<1x1xf32>
    tpu.vector_store %arg8[%c0_22, %c0_23], %57 {strides = array<i32>} : memref<1x1xf32, #tpu.memory_space<vmem>>, vector<1x1xf32>,
    %c0_i32_24 = arith.constant 0 : i32
    %59 = arith.cmpi eq, %arg1, %c0_i32_24 : i32
    %60 = arith.extui %59 : i1 to i32
    %c0_i32_25 = arith.constant 0 : i32
    %61 = arith.cmpi ne, %60, %c0_i32_25 : i32
    scf.if %61 {
      %62 = tpu.iota {dimensions = array<i32: 0>} : vector<8x128xi32>
      %63 = tpu.iota {dimensions = array<i32: 1>} : vector<8x128xi32>
      %c0_i32_26 = arith.constant 0 : i32
      %64 = vector.broadcast %c0_i32_26 : i32 to vector<8x128xi32>
      %65 = arith.cmpi eq, %62, %64 : vector<8x128xi32>
      %c0_i32_27 = arith.constant 0 : i32
      %66 = vector.broadcast %c0_i32_27 : i32 to vector<8x128xi32>
      %67 = arith.cmpi eq, %63, %66 : vector<8x128xi32>
      %68 = arith.andi %65, %67 : vector<8x128xi1>
      %c0_28 = arith.constant 0 : index
      %c0_29 = arith.constant 0 : index
      %69 = vector.load %arg7[%c0_28, %c0_29] : memref<1x1xf32, #tpu.memory_space<vmem>>, vector<1x1xf32>
      %70 = vector.shape_cast %69 : vector<1x1xf32> to vector<1x1x1xf32>
      %cst_30 = arith.constant dense<0.000000e+00> : vector<1xf32>
      %71 = vector.multi_reduction <add>, %70, %cst_30 [1, 2] : vector<1x1x1xf32> to vector<1xf32>
      %72 = vector.shape_cast %71 : vector<1xf32> to vector<1x1x1xf32>
      %73 = vector.extract %72[0, 0, 0] : f32 from vector<1x1x1xf32>
      %cst_31 = arith.constant 0.000000e+00 : f32
      %74 = vector.broadcast %73 : f32 to vector<8x128xf32>
      %75 = vector.broadcast %cst_31 : f32 to vector<8x128xf32>
      %76 = arith.select %68, %74, %75 : vector<8x128xi1>, vector<8x128xf32>
      %c0_32 = arith.constant 0 : index
      %c0_33 = arith.constant 0 : index
      %77 = vector.load %arg5[%c0_32, %c0_33] : memref<8x128xf32, #tpu.memory_space<vmem>>, vector<8x128xf32>
      tpu.vector_store %arg5[%c0_32, %c0_33], %76 {strides = array<i32>} : memref<8x128xf32, #tpu.memory_space<vmem>>, vector<8x128xf32>,
      %c0_34 = arith.constant 0 : index
      %c0_35 = arith.constant 0 : index
      %78 = vector.load %arg8[%c0_34, %c0_35] : memref<1x1xf32, #tpu.memory_space<vmem>>, vector<1x1xf32>
      %79 = vector.shape_cast %78 : vector<1x1xf32> to vector<1x1x1xf32>
      %cst_36 = arith.constant dense<0.000000e+00> : vector<1xf32>
      %80 = vector.multi_reduction <add>, %79, %cst_36 [1, 2] : vector<1x1x1xf32> to vector<1xf32>
      %81 = vector.shape_cast %80 : vector<1xf32> to vector<1x1x1xf32>
      %82 = vector.extract %81[0, 0, 0] : f32 from vector<1x1x1xf32>
      %cst_37 = arith.constant 0.000000e+00 : f32
      %83 = vector.broadcast %82 : f32 to vector<8x128xf32>
      %84 = vector.broadcast %cst_37 : f32 to vector<8x128xf32>
      %85 = arith.select %68, %83, %84 : vector<8x128xi1>, vector<8x128xf32>
      %c0_38 = arith.constant 0 : index
      %c0_39 = arith.constant 0 : index
      %86 = vector.load %arg6[%c0_38, %c0_39] : memref<8x128xf32, #tpu.memory_space<vmem>>, vector<8x128xf32>
      tpu.vector_store %arg6[%c0_38, %c0_39], %85 {strides = array<i32>} : memref<8x128xf32, #tpu.memory_space<vmem>>, vector<8x128xf32>,
    } else {
    }
    return
  }
  func.func @transform_0(%arg0: i32, %arg1: i32) -> (i32, i32) {
    %c1_i32 = arith.constant 1 : i32
    %0 = arith.muli %arg0, %c1_i32 : i32
    %1 = arith.addi %0, %arg1 : i32
    %c0_i32 = arith.constant 0 : i32
    %2 = arith.minsi %1, %c0_i32 : i32
    %c0_i32_0 = arith.constant 0 : i32
    %c0_i32_1 = arith.constant 0 : i32
    return %2, %c0_i32_0 : i32, i32
  }
  func.func @transform_1(%arg0: i32, %arg1: i32) -> (i32, i32) {
    %c1_i32 = arith.constant 1 : i32
    %0 = arith.muli %arg0, %c1_i32 : i32
    %1 = arith.addi %0, %arg1 : i32
    %c0_i32 = arith.constant 0 : i32
    %2 = arith.minsi %1, %c0_i32 : i32
    %c0_i32_0 = arith.constant 0 : i32
    %c0_i32_1 = arith.constant 0 : i32
    return %2, %c0_i32_0 : i32, i32
  }
  func.func @transform_2(%arg0: i32, %arg1: i32) -> (i32, i32) {
    %c1_i32 = arith.constant 1 : i32
    %0 = arith.muli %arg0, %c1_i32 : i32
    %1 = arith.addi %0, %arg1 : i32
    %c0_i32 = arith.constant 0 : i32
    %2 = arith.minsi %1, %c0_i32 : i32
    %c0_i32_0 = arith.constant 0 : i32
    %c0_i32_1 = arith.constant 0 : i32
    return %2, %c0_i32_0 : i32, i32
  }
  func.func @transform_3(%arg0: i32, %arg1: i32) -> (i32, i32) {
    %c0_i32 = arith.constant 0 : i32
    %c0_i32_0 = arith.constant 0 : i32
    return %arg0, %c0_i32 : i32, i32
  }
  func.func @transform_4(%arg0: i32, %arg1: i32) -> (i32, i32) {
    %c0_i32 = arith.constant 0 : i32
    %c0_i32_0 = arith.constant 0 : i32
    return %arg0, %c0_i32 : i32, i32
  }
}

</mosaic_0001>

<llo_original>
// kernel: tpu_custom_call.1
$region0: #{tpu_custom_call.1}
  #allocation0 [shape = 'u32[]', space=smem, size = 0x4, offset = 0x4, fixed_abs, tag = 'smem constant byte address 0x4 - core index']
  #allocation1 [shape = 'u32[144,128]{1,0:T(1,128)}', space=vmem, size = 0x12000, scoped, tag = 'internal scratch']
  #allocation2 [shape = 'f32[1,1]{1,0:T(1,128)}', space=vmem, size = 0x200, scoped, tag = 'scratch operand']
  #allocation3 [shape = 'f32[1,1]{1,0:T(1,128)}', space=vmem, size = 0x200, scoped, tag = 'scratch operand']
  %s0 = inlined_call_operand.hbm [shape: f32[16,8], index: 0, kind: input, shape index: {}]
  %s1 = inlined_call_operand.hbm [shape: s32[16,1], index: 1, kind: input, shape index: {}]
  %s2 = inlined_call_operand.hbm [shape: f32[16,1], index: 2, kind: input, shape index: {}]
  %s3 = inlined_call_operand.hbm [shape: f32[8,128], index: 3, kind: output, shape index: {0}]
  %s4 = inlined_call_operand.hbm [shape: f32[8,128], index: 4, kind: output, shape index: {1}]
  %5 = xla_tuple %s3, %s4
  %s6 = sld [smem:[#allocation0]]
  $region50: #{tpu_custom_call.1} parent=0
    _
  %s8 = ssub.s32 1, %s6
  %s9 = scalar_select 0, %s8, %s6
  $region1: #{tpu_custom_call.1} parent=0
    #allocation4 [shape = 'u8[8192]{0}', space=vmem, size = 0x2000, scoped, tag = 'input window, operand 0, single buffered']
    #allocation5 [shape = 's32[1]{0}', space=sflag, size = 0x4, scoped, tag = 'scoped memory for tpu_custom_call.1']
    #allocation6 [shape = 's32[1]{0}', space=sflag, size = 0x4, scoped, tag = 'scoped memory for tpu_custom_call.1']
    #allocation7 [shape = 'u8[8192]{0}', space=vmem, size = 0x2000, scoped, tag = 'input window, operand 1, single buffered']
    #allocation8 [shape = 's32[1]{0}', space=sflag, size = 0x4, scoped, tag = 'scoped memory for tpu_custom_call.1']
    #allocation9 [shape = 'u8[8192]{0}', space=vmem, size = 0x2000, scoped, tag = 'input window, operand 2, single buffered']
    #allocation10 [shape = 'u8[4096]{0}', space=vmem, size = 0x1000, scoped, tag = 'output window, operand 0, single buffered']
    #allocation11 [shape = 'u8[4096]{0}', space=vmem, size = 0x1000, scoped, tag = 'output window, operand 1, single buffered']
    #allocation12 [shape = 's32[1]{0}', space=sflag, size = 0x4, scoped, tag = 'scoped memory for tpu_custom_call.1']
    %10 = vsyncpa [#allocation5], 0
    %11 = vsyncpa [#allocation8], 0
    %12 = vsyncpa [#allocation6], 0
    %13 = vsyncpa [#allocation12], 0
    // Predicated region
    $region2: #{tpu_custom_call.1} parent=1 // pred_check
      _
    $region3: #{tpu_custom_call.1} parent=1 // pred_check_branch
      %15 = sbr.rel (0) target = $region5
    $region4: #{tpu_custom_call.1} parent=1 // pred_region
      %s16 = sadd.s32 0, 0
      %p17 = scmp.lt.s32.totalorder %s16, 0
      %s18 = scalar_select %p17, %s16, 0
      %s19 = smul.u32 2, %s18
      %s21 = ssub.s32 256, 256
      %22 = vsyncadd [#allocation5], %s21
      %s23 = smul.addr %s19, 128
      %s24 = scalar_lea.hbm %s0, %s23
      %s25 = sshll.u32 [#allocation4], 4
      %s26 = int_to_ptr.vmem [resolvable:$true] %s25
      %31 = dma.hbm_to_vmem [thread:$0]  %s24, 256, %s26, [#allocation5], 128, 128, 8
    $region5: #{tpu_custom_call.1} parent=1 // pred_fallthru
      _
    // Predicated region
    $region6: #{tpu_custom_call.1} parent=1 // pred_check
      _
    $region7: #{tpu_custom_call.1} parent=1 // pred_check_branch
      %33 = sbr.rel (0) target = $region9
    $region8: #{tpu_custom_call.1} parent=1 // pred_region
      %s34 = sadd.s32 0, 0
      %p35 = scmp.lt.s32.totalorder %s34, 0
      %s36 = scalar_select %p35, %s34, 0
      %s37 = smul.u32 2, %s36
      %s39 = ssub.s32 256, 256
      %40 = vsyncadd [#allocation8], %s39
      %s41 = smul.addr %s37, 128
      %s42 = scalar_lea.hbm %s1, %s41
      %s43 = sshll.u32 [#allocation7], 4
      %s44 = int_to_ptr.vmem [resolvable:$true] %s43
      %49 = dma.hbm_to_vmem [thread:$0]  %s42, 256, %s44, [#allocation8], 128, 128, 8
    $region9: #{tpu_custom_call.1} parent=1 // pred_fallthru
      _
    // Predicated region
    $region10: #{tpu_custom_call.1} parent=1 // pred_check
      _
    $region11: #{tpu_custom_call.1} parent=1 // pred_check_branch
      %51 = sbr.rel (0) target = $region13
    $region12: #{tpu_custom_call.1} parent=1 // pred_region
      %s52 = sadd.s32 0, 0
      %p53 = scmp.lt.s32.totalorder %s52, 0
      %s54 = scalar_select %p53, %s52, 0
      %s55 = smul.u32 2, %s54
      %s57 = ssub.s32 256, 256
      %58 = vsyncadd [#allocation8], %s57
      %s59 = smul.addr %s55, 128
      %s60 = scalar_lea.hbm %s2, %s59
      %s61 = sshll.u32 [#allocation9], 4
      %s62 = int_to_ptr.vmem [resolvable:$true] %s61
      %67 = dma.hbm_to_vmem [thread:$0]  %s60, 256, %s62, [#allocation8], 128, 128, 8
    $region13: #{tpu_custom_call.1} parent=1 // pred_fallthru
      _
    // Predicated region
    $region14: #{tpu_custom_call.1} parent=1 // pred_check
      _
    $region15: #{tpu_custom_call.1} parent=1 // pred_check_branch
      %69 = sbr.rel (0) target = $region17
    $region16: #{tpu_custom_call.1} parent=1 // pred_region
      %70 = dma.done [#allocation5], 256
    $region17: #{tpu_custom_call.1} parent=1 // pred_fallthru
      _
    // Predicated region
    $region18: #{tpu_custom_call.1} parent=1 // pred_check
      _
    $region19: #{tpu_custom_call.1} parent=1 // pred_check_branch
      %72 = sbr.rel (0) target = $region21
    $region20: #{tpu_custom_call.1} parent=1 // pred_region
      %73 = dma.done [#allocation8], 256
    $region21: #{tpu_custom_call.1} parent=1 // pred_fallthru
      _
    // Predicated region
    $region22: #{tpu_custom_call.1} parent=1 // pred_check
      _
    $region23: #{tpu_custom_call.1} parent=1 // pred_check_branch
      %75 = sbr.rel (0) target = $region25
    $region24: #{tpu_custom_call.1} parent=1 // pred_region
      %76 = dma.done [#allocation8], 256
    $region25: #{tpu_custom_call.1} parent=1 // pred_fallthru
      _
    %s77 = sadd.s32 0, 0
    %p78 = scmp.lt.s32.totalorder %s77, 0
    %s79 = scalar_select %p78, %s77, 0
    %s80 = smul.u32 2, %s79
    %s81 = sadd.s32 0, 0
    %p82 = scmp.lt.s32.totalorder %s81, 0
    %s83 = scalar_select %p82, %s81, 0
    %s84 = smul.u32 2, %s83
    %s85 = sadd.s32 0, 0
    %p86 = scmp.lt.s32.totalorder %s85, 0
    %s87 = scalar_select %p86, %s85, 0
    %s88 = smul.u32 2, %s87
    %p89 = scmp.eq.s32.totalorder 0, 0
    // Predicated region
    $region26: #{tpu_custom_call.1} parent=1 // pred_check
      %p90 = pneg %p89
    $region27: #{tpu_custom_call.1} parent=1 // pred_check_branch
      %92 = sbr.rel (%p90) target = $region29
    $region28: #{tpu_custom_call.1} parent=1 // pred_region
      %vm93 = vcmask 0
      %94 = vst.msk [vmem:[#allocation2] sm:$0x1] %vm93, 0.0
      %95 = vst.msk [vmem:[#allocation3] sm:$0x1] %vm93, 0.0
    $region29: #{tpu_custom_call.1} parent=1 // pred_fallthru
      _
    %s96 = sadd.s32 0, 0
    %s97 = smul.u32 %s96, 16
    %v98 = vlaneseq
    %v99 = vshrl.u32 %v98, 7
    %v100 = vadd.s32 %v99, 8
    %v101 = vstv %s97
    %v102 = vadd.s32 %v99, %v101
    %v103 = vadd.s32 %v100, %v101
    %vm104 = vcmp.lt.s32.totalorder %v102, 16
    %vm105 = vcmp.lt.s32.totalorder %v103, 16
    %v106 = vld [vmem:[#allocation4] sm:$0xff]
    %v107 = vld [vmem:[#allocation4 + $0x8] sm:$0xff]
    %v108 = vld [vmem:[#allocation7] sm:$0xff]
    %v109 = vld [vmem:[#allocation7 + $0x8] sm:$0xff]
    %v110 = vld [vmem:[#allocation9] sm:$0xff]
    %v111 = vld [vmem:[#allocation9 + $0x8] sm:$0xff]
    %v112 = vlaneseq
    %v113 = vand.u32 %v112, 127
    %114 = vset.pattern.permute.xlu0 0
    %115 = vperm.xlu0 %114, %v108
    %v116 = vpop.permute.xlu0 %115
    %117 = vset.pattern.permute.xlu0 0
    %118 = vperm.xlu0 %117, %v109
    %v119 = vpop.permute.xlu0 %118
    %vm120 = vcmp.eq.s32.totalorder %v113, %v116
    %vm121 = vcmp.eq.s32.totalorder %v113, %v119
    %vm122 = vcmask 64512
    %v123 = vsel %vm122, %v106, -inf
    %124 = vmax.xlane.f32.xlu0 %v123
    %v125 = vpop.xlane.xlu0 %124
    %v126 = vsel %vm122, %v107, -inf
    %127 = vmax.xlane.f32.xlu0 %v126
    %v128 = vpop.xlane.xlu0 %127
    %v129 = vsel %vm120, %v106, 0.0
    %v130 = vsel %vm121, %v107, 0.0
    %v131 = vsel %vm122, %v129, 0.0
    %132 = vadd.xlane.f32.xlu0 %v131
    %v133 = vpop.xlane.xlu0 %132
    %v134 = vsel %vm122, %v130, 0.0
    %135 = vadd.xlane.f32.xlu0 %v134
    %v136 = vpop.xlane.xlu0 %135
    %v137 = vsub.f32 %v106, %v125
    %v138 = vsub.f32 %v107, %v128
    %v139 = vmul.f32 %v137, 1.442695
    %v140 = vpow.pop %v139
    %v141 = vmul.f32 %v138, 1.442695
    %v142 = vpow.pop %v141
    %v143 = vsel %vm122, %v140, 0.0
    %144 = vadd.xlane.f32.xlu0 %v143
    %v145 = vpop.xlane.xlu0 %144
    %v146 = vsel %vm122, %v142, 0.0
    %147 = vadd.xlane.f32.xlu0 %v146
    %v148 = vpop.xlane.xlu0 %147
    %v149 = vlog2.pop %v145
    %v150 = vmul.f32 %v149, 0.6931472
    %v151 = vlog2.pop %v148
    %v152 = vmul.f32 %v151, 0.6931472
    %v153 = vsub.f32 %v133, %v125
    %v154 = vsub.f32 %v136, %v128
    %v155 = vsub.f32 %v153, %v150
    %v156 = vsub.f32 %v154, %v152
    %v157 = vsub.f32 0.0, %v110
    %v158 = vsub.f32 0.0, %v111
    %v159 = vmul.f32 %v157, %v155
    %v160 = vmul.f32 %v158, %v156
    %v161 = vmul.f32 %v155, 1.442695
    %v162 = vpow.pop %v161
    %v163 = vmul.f32 %v156, 1.442695
    %v164 = vpow.pop %v163
    %v165 = vsub.f32 1.0, %v162
    %v166 = vsub.f32 1.0, %v164
    %v167 = vmax.f32 %v165, 0.0
    %v168 = vmax.f32 %v166, 0.0
    %v169 = vmul.f32 %v167, %v167
    %v170 = vmul.f32 %v168, %v168
    %vm171 = vcmp.ne.s32.totalorder %v108, 4294967196
    %vm172 = vcmp.ne.s32.totalorder %v109, 4294967196
    %vm173 = vmand %vm104, %vm171
    %vm174 = vmand %vm105, %vm172
    %v175 = vmul.f32 %v169, %v159
    %v176 = vmul.f32 %v170, %v160
    %v177 = vsel %vm173, %v175, 0.0
    %v178 = vsel %vm174, %v176, 0.0
    %v179 = vld [vmem:[#allocation2] sm:$0x1]
    %vm180 = vcmask 7168
    %v181 = vsel %vm180, %v177, 0.0
    %v182 = vsel %vm180, %v178, 0.0
    %v183 = vadd.f32 %v181, %v182
    %v184 = vrot.slane %v183, 4
    %v185 = vadd.f32 %v183, %v184
    %v186 = vrot.slane %v185, 2
    %v187 = vadd.f32 %v185, %v186
    %v188 = vrot.slane %v187, 1
    %v189 = vadd.f32 %v187, %v188
    %v190 = vadd.f32 %v179, %v189
    %vm191 = vcmask 0
    %192 = vst.msk [vmem:[#allocation2] sm:$0x1] %vm191, %v190
    %v193 = vld [vmem:[#allocation3] sm:$0x1]
    %v194 = vsel %vm173, 1, 0
    %v195 = vsel %vm174, 1, 0
    %v196 = vcvt.s32.f32 %v194
    %v197 = vcvt.s32.f32 %v195
    %v198 = vsel %vm180, %v196, 0.0
    %v199 = vsel %vm180, %v197, 0.0
    %v200 = vadd.f32 %v198, %v199
    %v201 = vrot.slane %v200, 4
    %v202 = vadd.f32 %v200, %v201
    %v203 = vrot.slane %v202, 2
    %v204 = vadd.f32 %v202, %v203
    %v205 = vrot.slane %v204, 1
    %v206 = vadd.f32 %v204, %v205
    %v207 = vadd.f32 %v193, %v206
    %208 = vst.msk [vmem:[#allocation3] sm:$0x1] %vm191, %v207
    // Predicated region
    $region30: #{tpu_custom_call.1} parent=1 // pred_check
      %p209 = pneg %p89
    $region31: #{tpu_custom_call.1} parent=1 // pred_check_branch
      %211 = sbr.rel (%p209) target = $region33
    $region32: #{tpu_custom_call.1} parent=1 // pred_region
      %vm212 = vcmp.eq.s32.totalorder %v99, 0
      %vm213 = vcmp.eq.s32.totalorder %v113, 0
      %vm214 = vmand %vm212, %vm213
      %v215 = vld [vmem:[#allocation2] sm:$0x1]
      %v216 = vadd.f32 %v215, 0.0
      %s217 = vtos %v216
      %v218 = vstv %s217
      %v219 = vsel %vm214, %v218, 0.0
      %220 = vst [vmem:[#allocation10] sm:$0xff] %v219
      %v221 = vld [vmem:[#allocation3] sm:$0x1]
      %v222 = vadd.f32 %v221, 0.0
      %s223 = vtos %v222
      %v224 = vstv %s223
      %v225 = vsel %vm214, %v224, 0.0
      %226 = vst [vmem:[#allocation11] sm:$0xff] %v225
    $region33: #{tpu_custom_call.1} parent=1 // pred_fallthru
      _
    // Predicated region
    $region34: #{tpu_custom_call.1} parent=1 // pred_check
      _
    $region35: #{tpu_custom_call.1} parent=1 // pred_check_branch
      %228 = sbr.rel (0) target = $region37
    $region36: #{tpu_custom_call.1} parent=1 // pred_region
      %s230 = ssub.s32 128, 128
      %231 = vsyncadd [#allocation6], %s230
      %s233 = sshll.u32 [#allocation10], 4
      %s234 = int_to_ptr.vmem [resolvable:$true] %s233
      %236 = dma.vmem_to_hbm [thread:$0]  %s234, 128, %s3, [#allocation6]
    $region37: #{tpu_custom_call.1} parent=1 // pred_fallthru
      _
    // Predicated region
    $region38: #{tpu_custom_call.1} parent=1 // pred_check
      _
    $region39: #{tpu_custom_call.1} parent=1 // pred_check_branch
      %238 = sbr.rel (0) target = $region41
    $region40: #{tpu_custom_call.1} parent=1 // pred_region
      %s240 = ssub.s32 128, 128
      %241 = vsyncadd [#allocation12], %s240
      %s243 = sshll.u32 [#allocation11], 4
      %s244 = int_to_ptr.vmem [resolvable:$true] %s243
      %246 = dma.vmem_to_hbm [thread:$0]  %s244, 128, %s4, [#allocation12]
    $region41: #{tpu_custom_call.1} parent=1 // pred_fallthru
      _
    // Predicated region
    $region42: #{tpu_custom_call.1} parent=1 // pred_check
      _
    $region43: #{tpu_custom_call.1} parent=1 // pred_check_branch
      %248 = sbr.rel (0) target = $region45
    $region44: #{tpu_custom_call.1} parent=1 // pred_region
      %249 = dma.done [#allocation6], 128
    $region45: #{tpu_custom_call.1} parent=1 // pred_fallthru
      _
    // Predicated region
    $region46: #{tpu_custom_call.1} parent=1 // pred_check
      _
    $region47: #{tpu_custom_call.1} parent=1 // pred_check_branch
      %251 = sbr.rel (0) target = $region49
    $region48: #{tpu_custom_call.1} parent=1 // pred_region
      %252 = dma.done [#allocation12], 128
    $region49: #{tpu_custom_call.1} parent=1 // pred_fallthru
      _
    %253 = vsyncpa [#allocation5], 1
    %254 = vsyncpa [#allocation8], 1
    %255 = vsyncpa [#allocation6], 1
    %256 = vsyncpa [#allocation12], 1

</llo_original>
